<compile_context>
chip_gen: v7x
topology: tpu7x:2x2x1
jax: 0.10.0
libtpu: 0.0.40
codegen_flags: <defaults>
</compile_context>

<pallas_src>
import functools

import jax
import jax.numpy as jnp
from jax import lax
from jax.experimental import pallas as pl
from jax.experimental.pallas import tpu as pltpu


def _fused_linear_kernel(x_ref, w_ref, b_ref, o_ref, acc_ref):
    # x_ref:   (tb, tk)   -- input tile (re-used across the N axis)
    # w_ref:   (tn, tk)   -- fused-weight tile, PyTorch (row=out, col=in) layout
    # b_ref:   (1, tn)    -- fused-bias tile (kept 2-D: natural sublane/lane layout)
    # o_ref:   (tb, tn)   -- lane-dense output tile
    # acc_ref: (tb, tn)   -- f32 accumulator across the K (contraction) axis
    k = pl.program_id(2)

    @pl.when(k == 0)
    def _():
        acc_ref[...] = jnp.zeros_like(acc_ref)

    # Contract on IN directly (x:(tb,tk) x w:(tn,tk) -> (tb,tn)); no w.T relayout.
    acc_ref[...] += lax.dot_general(
        x_ref[...], w_ref[...],
        dimension_numbers=(((1,), (1,)), ((), ())),
        preferred_element_type=jnp.float32)

    @pl.when(k == pl.num_programs(2) - 1)
    def _():
        # Bias add in f32, broadcast (1, tn) over the batch rows.
        o_ref[...] = (acc_ref[...] + b_ref[...]).astype(o_ref.dtype)


def _pick_tile(dim, preferred, align):
    """Largest multiple of `align` <= preferred that evenly divides `dim`.

    Falls back to the full dim (always a legal block shape)."""
    if dim <= preferred:
        return dim
    t = (preferred // align) * align
    while t >= align:
        if dim % t == 0:
            return t
        t -= align
    return dim


@functools.partial(jax.jit, static_argnames=())
def custom_module_list_forward_stacked(x, weights, biases):
    """Fused forward: one lane-dense matmul over all modules.

    Args:
      x:       (B, IN)
      weights: (M, OUT, IN)  -- stacked nn.Linear weights (PyTorch layout)
      biases:  (M, OUT)      -- stacked nn.Linear biases

    Returns:
      (B, M*OUT) array; column block [m*OUT:(m+1)*OUT] == module m's output.
    """
    M, OUT, IN = weights.shape
    B = x.shape[0]
    N = M * OUT

    w_all = weights.reshape(N, IN)          # (M*OUT, IN)
    b_all = biases.reshape(1, N)            # (1, M*OUT), kept 2-D

    # Tile selection: lane axis (tk / tn) aligned to 128, sublane (tb) to 8.
    # Targets keep per-step footprint (x + 2*w + 2*out + acc) far below the
    # v7x 64 MiB / default 32 MiB scoped-VMEM budgets while staying big enough
    # to amortize the ~0.35 us per-step cost.
    tb = _pick_tile(B, 128, 8)
    tn = _pick_tile(N, 512, 128)
    tk = _pick_tile(IN, 1024, 128)

    grid = (pl.cdiv(B, tb), pl.cdiv(N, tn), pl.cdiv(IN, tk))

    return pl.pallas_call(
        _fused_linear_kernel,
        out_shape=jax.ShapeDtypeStruct((B, N), x.dtype),
        grid_spec=pltpu.PrefetchScalarGridSpec(
            num_scalar_prefetch=0,
            grid=grid,
            in_specs=[
                pl.BlockSpec((tb, tk), lambda i, j, k: (i, k)),   # x
                pl.BlockSpec((tn, tk), lambda i, j, k: (j, k)),   # fused weights
                pl.BlockSpec((1, tn), lambda i, j, k: (0, j)),    # fused bias
            ],
            out_specs=pl.BlockSpec((tb, tn), lambda i, j, k: (i, j)),
            scratch_shapes=[pltpu.VMEM((tb, tn), jnp.float32)],
        ),
        compiler_params=pltpu.CompilerParams(
            # batch / fused-output axes are independent (v7x megacore sharding);
            # contraction axis carries the accumulator -> arbitrary.
            dimension_semantics=("parallel", "parallel", "arbitrary"),
        ),
    )(x, w_all, b_all)


def custom_module_list_forward(x, weights, biases):
    """Mirror of CustomModuleList.forward: returns a Python list of per-module
    outputs, each (B, OUT).  The heavy lifting happens in one fused kernel;
    the list is produced by cheap wrapper-side slices of the stacked slab."""
    M, OUT, _ = weights.shape
    stacked = custom_module_list_forward_stacked(x, weights, biases)  # (B, M*OUT)
    return [stacked[:, m * OUT:(m + 1) * OUT] for m in range(M)]


if __name__ == "__main__":
    key = jax.random.PRNGKey(0)

    # Small, module-consistent shapes: 4 Linear(32 -> 32) sub-modules, batch=8.
    # M*OUT = 128 -> the fused output is exactly one lane-dense vreg width.
    num_modules = 4
    batch = 8
    in_features = 32
    out_features = 32

    kx, kw, kb = jax.random.split(key, 3)
    x = jax.random.normal(kx, (batch, in_features), dtype=jnp.float32)

    # Deterministic parameter init (Kaiming-uniform-like bound, as nn.Linear).
    bound = 1.0 / (in_features ** 0.5)
    weights = jax.random.uniform(
        kw, (num_modules, out_features, in_features),
        minval=-bound, maxval=bound, dtype=jnp.float32)
    biases = jax.random.uniform(
        kb, (num_modules, out_features),
        minval=-bound, maxval=bound, dtype=jnp.float32)

    outs = custom_module_list_forward(x, weights, biases)
    outs = [jax.block_until_ready(o) for o in outs]

    # Reference check against plain JAX (same semantics as nn.Linear per module).
    ok = True
    for m in range(num_modules):
        ref = x @ weights[m].T + biases[m]
        ok = ok and bool(jnp.allclose(outs[m], ref, atol=1e-5, rtol=1e-5))
    assert ok, "Pallas output mismatch vs reference"

    print("KERNEL_OK")
</pallas_src>

<mosaic_0001>
module attributes {stable_mosaic.version = 11 : i64} {
  func.func @_fused_linear_kernel(%arg0: i32, %arg1: i32, %arg2: i32, %arg3: memref<8x32xf32, #tpu.memory_space<vmem>>, %arg4: memref<128x32xf32, #tpu.memory_space<vmem>>, %arg5: memref<1x128xf32, #tpu.memory_space<vmem>>, %arg6: memref<8x128xf32, #tpu.memory_space<vmem>>, %arg7: memref<8x128xf32, #tpu.memory_space<vmem>>) attributes {dimension_semantics = [#tpu.dimension_semantics<parallel>, #tpu.dimension_semantics<parallel>, #tpu.dimension_semantics<arbitrary>], iteration_bounds = array<i64: 1, 1, 1>, scalar_prefetch = 0 : i64, scratch_operands = 1 : i64, tpu.core_type = #tpu.core_type<tc>, window_params = [{transform_indices = @transform_0, window_bounds = array<i64: 8, 32>}, {transform_indices = @transform_1, window_bounds = array<i64: 128, 32>}, {transform_indices = @transform_2, window_bounds = array<i64: 1, 128>}, {transform_indices = @transform_3, window_bounds = array<i64: 8, 128>}]} {
    %c0_i32 = arith.constant 0 : i32
    %0 = arith.cmpi eq, %arg2, %c0_i32 : i32
    %1 = arith.extui %0 : i1 to i32
    %c0_i32_0 = arith.constant 0 : i32
    %2 = arith.cmpi ne, %1, %c0_i32_0 : i32
    scf.if %2 {
      %cst_10 = arith.constant 0.000000e+00 : f32
      %12 = vector.broadcast %cst_10 : f32 to vector<8x128xf32>
      %c0_11 = arith.constant 0 : index
      %c0_12 = arith.constant 0 : index
      %13 = vector.load %arg7[%c0_11, %c0_12] : memref<8x128xf32, #tpu.memory_space<vmem>>, vector<8x128xf32>
      tpu.vector_store %arg7[%c0_11, %c0_12], %12 {strides = array<i32>} : memref<8x128xf32, #tpu.memory_space<vmem>>, vector<8x128xf32>,
    } else {
    }
    %c0 = arith.constant 0 : index
    %c0_1 = arith.constant 0 : index
    %3 = vector.load %arg7[%c0, %c0_1] : memref<8x128xf32, #tpu.memory_space<vmem>>, vector<8x128xf32>
    %c0_2 = arith.constant 0 : index
    %c0_3 = arith.constant 0 : index
    %4 = vector.load %arg3[%c0_2, %c0_3] : memref<8x32xf32, #tpu.memory_space<vmem>>, vector<8x32xf32>
    %c0_4 = arith.constant 0 : index
    %c0_5 = arith.constant 0 : index
    %5 = vector.load %arg4[%c0_4, %c0_5] : memref<128x32xf32, #tpu.memory_space<vmem>>, vector<128x32xf32>
    %cst = arith.constant dense<0.000000e+00> : vector<8x128xf32>
    %6 = tpu.matmul %4, %5, %cst {dimension_numbers = #tpu.dot_dimension_numbers<[1], [1], [0], [0], [0, 0, 1, 0], [], []>} : vector<8x32xf32>, vector<128x32xf32>, vector<8x128xf32> -> vector<8x128xf32>
    %7 = arith.addf %3, %6 : vector<8x128xf32>
    %c0_6 = arith.constant 0 : index
    %c0_7 = arith.constant 0 : index
    %8 = vector.load %arg7[%c0_6, %c0_7] : memref<8x128xf32, #tpu.memory_space<vmem>>, vector<8x128xf32>
    tpu.vector_store %arg7[%c0_6, %c0_7], %7 {strides = array<i32>} : memref<8x128xf32, #tpu.memory_space<vmem>>, vector<8x128xf32>,
    %c0_i32_8 = arith.constant 0 : i32
    %9 = arith.cmpi eq, %arg2, %c0_i32_8 : i32
    %10 = arith.extui %9 : i1 to i32
    %c0_i32_9 = arith.constant 0 : i32
    %11 = arith.cmpi ne, %10, %c0_i32_9 : i32
    scf.if %11 {
      %c0_10 = arith.constant 0 : index
      %c0_11 = arith.constant 0 : index
      %12 = vector.load %arg7[%c0_10, %c0_11] : memref<8x128xf32, #tpu.memory_space<vmem>>, vector<8x128xf32>
      %c0_12 = arith.constant 0 : index
      %c0_13 = arith.constant 0 : index
      %13 = vector.load %arg5[%c0_12, %c0_13] : memref<1x128xf32, #tpu.memory_space<vmem>>, vector<1x128xf32>
      %14 = vector.broadcast %13 : vector<1x128xf32> to vector<8x128xf32>
      %15 = arith.addf %12, %14 : vector<8x128xf32>
      %c0_14 = arith.constant 0 : index
      %c0_15 = arith.constant 0 : index
      %16 = vector.load %arg6[%c0_14, %c0_15] : memref<8x128xf32, #tpu.memory_space<vmem>>, vector<8x128xf32>
      tpu.vector_store %arg6[%c0_14, %c0_15], %15 {strides = array<i32>} : memref<8x128xf32, #tpu.memory_space<vmem>>, vector<8x128xf32>,
    } else {
    }
    return
  }
  func.func @transform_0(%arg0: i32, %arg1: i32, %arg2: i32) -> (i32, i32) {
    %c0_i32 = arith.constant 0 : i32
    return %arg0, %arg2 : i32, i32
  }
  func.func @transform_1(%arg0: i32, %arg1: i32, %arg2: i32) -> (i32, i32) {
    %c0_i32 = arith.constant 0 : i32
    return %arg1, %arg2 : i32, i32
  }
  func.func @transform_2(%arg0: i32, %arg1: i32, %arg2: i32) -> (i32, i32) {
    %c0_i32 = arith.constant 0 : i32
    %c0_i32_0 = arith.constant 0 : i32
    return %c0_i32, %arg1 : i32, i32
  }
  func.func @transform_3(%arg0: i32, %arg1: i32, %arg2: i32) -> (i32, i32) {
    %c0_i32 = arith.constant 0 : i32
    return %arg0, %arg1 : i32, i32
  }
}

</mosaic_0001>

<llo_original>
// kernel: custom_module_list_forward_stacked.1
$region0: #{custom_module_list_forward_stacked.1}
  #allocation0 [shape = 'u32[]', space=smem, size = 0x4, offset = 0x4, fixed_abs, tag = 'smem constant byte address 0x4 - core index']
  #allocation1 [shape = 'u32[144,128]{1,0:T(1,128)}', space=vmem, size = 0x12000, scoped, tag = 'internal scratch']
  #allocation2 [shape = 'f32[8,128]{1,0:T(8,128)}', space=vmem, size = 0x1000, scoped, tag = 'scratch operand']
  %s0 = inlined_call_operand.vmem [shape: f32[8,32], index: 0, kind: input, shape index: {}]
  %s1 = inlined_call_operand.hbm [shape: f32[128,32], index: 1, kind: input, shape index: {}]
  %s2 = inlined_call_operand.vmem [shape: f32[1,128], index: 2, kind: input, shape index: {}]
  %s3 = inlined_call_operand.hbm [shape: f32[8,128], index: 3, kind: output, shape index: {}]
  %s4 = sld [smem:[#allocation0]]
  $region34: #{custom_module_list_forward_stacked.1} parent=0
    _
  %s6 = ssub.s32 1, %s4
  %s7 = scalar_select 0, %s6, %s4
  $region1: #{custom_module_list_forward_stacked.1} parent=0
    #allocation3 [shape = 'u8[65536]{0}', space=vmem, size = 0x10000, scoped, tag = 'input window, operand 1, single buffered']
    #allocation4 [shape = 's32[1]{0}', space=sflag, size = 0x4, scoped, tag = 'scoped memory for custom_module_list_forward_stacked.1']
    #allocation5 [shape = 's32[1]{0}', space=sflag, size = 0x4, scoped, tag = 'scoped memory for custom_module_list_forward_stacked.1']
    #allocation6 [shape = 'u8[4096]{0}', space=vmem, size = 0x1000, scoped, tag = 'output window, operand 0, single buffered']
    %8 = vsyncpa [#allocation4], 0
    %9 = vsyncpa [#allocation5], 0
    // Predicated region
    $region2: #{custom_module_list_forward_stacked.1} parent=1 // pred_check
      _
    $region3: #{custom_module_list_forward_stacked.1} parent=1 // pred_check_branch
      %11 = sbr.rel (0) target = $region5
    $region4: #{custom_module_list_forward_stacked.1} parent=1 // pred_region
      _
    $region5: #{custom_module_list_forward_stacked.1} parent=1 // pred_fallthru
      _
    // Predicated region
    $region6: #{custom_module_list_forward_stacked.1} parent=1 // pred_check
      _
    $region7: #{custom_module_list_forward_stacked.1} parent=1 // pred_check_branch
      %13 = sbr.rel (0) target = $region9
    $region8: #{custom_module_list_forward_stacked.1} parent=1 // pred_region
      %s15 = ssub.s32 2048, 2048
      %16 = vsyncadd [#allocation4], %s15
      %s17 = sshll.u32 [#allocation3], 4
      %s18 = int_to_ptr.vmem [resolvable:$true] %s17
      %23 = dma.hbm_to_vmem [thread:$0]  %s1, 2048, %s18, [#allocation4], 128, 128, 8
    $region9: #{custom_module_list_forward_stacked.1} parent=1 // pred_fallthru
      _
    // Predicated region
    $region10: #{custom_module_list_forward_stacked.1} parent=1 // pred_check
      _
    $region11: #{custom_module_list_forward_stacked.1} parent=1 // pred_check_branch
      %25 = sbr.rel (0) target = $region13
    $region12: #{custom_module_list_forward_stacked.1} parent=1 // pred_region
      _
    $region13: #{custom_module_list_forward_stacked.1} parent=1 // pred_fallthru
      _
    // Predicated region
    $region14: #{custom_module_list_forward_stacked.1} parent=1 // pred_check
      _
    $region15: #{custom_module_list_forward_stacked.1} parent=1 // pred_check_branch
      %27 = sbr.rel (0) target = $region17
    $region16: #{custom_module_list_forward_stacked.1} parent=1 // pred_region
      %28 = dma.done [#allocation4], 2048
    $region17: #{custom_module_list_forward_stacked.1} parent=1 // pred_fallthru
      _
    %p29 = scmp.eq.s32.totalorder 0, 0
    // Predicated region
    $region18: #{custom_module_list_forward_stacked.1} parent=1 // pred_check
      %p30 = pneg %p29
    $region19: #{custom_module_list_forward_stacked.1} parent=1 // pred_check_branch
      %32 = sbr.rel (%p30) target = $region21
    $region20: #{custom_module_list_forward_stacked.1} parent=1 // pred_region
      %33 = vst [vmem:[#allocation2] sm:$0xff] 0.0
    $region21: #{custom_module_list_forward_stacked.1} parent=1 // pred_fallthru
      _
    %v34 = vld [vmem:[#allocation2] sm:$0xff]
    %v35 = vld [vmem:[%s0] sm:$0xff]
    %v36 = vld [vmem:[#allocation3] sm:$0xff]
    %v37 = vld [vmem:[#allocation3 + $0x8] sm:$0xff]
    %v38 = vld [vmem:[#allocation3 + $0x10] sm:$0xff]
    %v39 = vld [vmem:[#allocation3 + $0x18] sm:$0xff]
    %v40 = vld [vmem:[#allocation3 + $0x20] sm:$0xff]
    %v41 = vld [vmem:[#allocation3 + $0x28] sm:$0xff]
    %v42 = vld [vmem:[#allocation3 + $0x30] sm:$0xff]
    %v43 = vld [vmem:[#allocation3 + $0x38] sm:$0xff]
    %v44 = vld [vmem:[#allocation3 + $0x40] sm:$0xff]
    %v45 = vld [vmem:[#allocation3 + $0x48] sm:$0xff]
    %v46 = vld [vmem:[#allocation3 + $0x50] sm:$0xff]
    %v47 = vld [vmem:[#allocation3 + $0x58] sm:$0xff]
    %v48 = vld [vmem:[#allocation3 + $0x60] sm:$0xff]
    %v49 = vld [vmem:[#allocation3 + $0x68] sm:$0xff]
    %v50 = vld [vmem:[#allocation3 + $0x70] sm:$0xff]
    %v51 = vld [vmem:[#allocation3 + $0x78] sm:$0xff]
    %vm52 = vcmask 261120
    %v54 = vsel %vm52, %v35, 0
    %v57 = vsel %vm52, %v36, 0
    %v60 = vsel %vm52, %v37, 0
    %v63 = vsel %vm52, %v38, 0
    %v66 = vsel %vm52, %v39, 0
    %v69 = vsel %vm52, %v40, 0
    %v72 = vsel %vm52, %v41, 0
    %v75 = vsel %vm52, %v42, 0
    %v78 = vsel %vm52, %v43, 0
    %v81 = vsel %vm52, %v44, 0
    %v84 = vsel %vm52, %v45, 0
    %v87 = vsel %vm52, %v46, 0
    %v90 = vsel %vm52, %v47, 0
    %v93 = vsel %vm52, %v48, 0
    %v96 = vsel %vm52, %v49, 0
    %v99 = vsel %vm52, %v50, 0
    %v102 = vsel %vm52, %v51, 0
    %104 = vmatprep.subr.mxu0 0.0
    %105 = vmatpush1.xpose.msra.mxu0 %v57
    %106 = vmatprep.subr.mxu0 0.0
    %107 = vmatpush1.xpose.msra.mxu0 %v60
    %108 = vmatprep.subr.mxu0 0.0
    %109 = vmatpush1.xpose.msra.mxu0 %v63
    %110 = vmatprep.subr.mxu0 0.0
    %111 = vmatpush1.xpose.msra.mxu0 %v66
    %112 = vmatprep.subr.mxu0 0.0
    %113 = vmatpush1.xpose.msra.mxu0 %v69
    %114 = vmatprep.subr.mxu0 0.0
    %115 = vmatpush1.xpose.msra.mxu0 %v72
    %116 = vmatprep.subr.mxu0 0.0
    %117 = vmatpush1.xpose.msra.mxu0 %v75
    %118 = vmatprep.subr.mxu0 0.0
    %119 = vmatpush1.xpose.msra.mxu0 %v78
    %120 = vmatprep.subr.mxu0 0.0
    %121 = vmatpush1.xpose.msra.mxu0 %v81
    %122 = vmatprep.subr.mxu0 0.0
    %123 = vmatpush1.xpose.msra.mxu0 %v84
    %124 = vmatprep.subr.mxu0 0.0
    %125 = vmatpush1.xpose.msra.mxu0 %v87
    %126 = vmatprep.subr.mxu0 0.0
    %127 = vmatpush1.xpose.msra.mxu0 %v90
    %128 = vmatprep.subr.mxu0 0.0
    %129 = vmatpush1.xpose.msra.mxu0 %v93
    %130 = vmatprep.subr.mxu0 0.0
    %131 = vmatpush1.xpose.msra.mxu0 %v96
    %132 = vmatprep.subr.mxu0 0.0
    %133 = vmatpush1.xpose.msra.mxu0 %v99
    %134 = vmatprep.subr.mxu0 0.0
    %135 = vmatpush1.xpose.msra.mxu0 %v102
    %136 = vmatprep.subr.mxu0 0.0
    %137 = vmatpush1.xpose.msra.mxu0 0.0
    %138 = vmatprep.subr.mxu0 0.0
    %139 = vmatpush1.xpose.msra.mxu0 0.0
    %140 = vmatprep.subr.mxu0 0.0
    %141 = vmatpush1.xpose.msra.mxu0 0.0
    %142 = vmatprep.subr.mxu0 0.0
    %143 = vmatpush1.xpose.msra.mxu0 0.0
    %144 = vmatprep.subr.mxu0 0.0
    %145 = vmatpush1.xpose.msra.mxu0 0.0
    %146 = vmatprep.subr.mxu0 0.0
    %147 = vmatpush1.xpose.msra.mxu0 0.0
    %148 = vmatprep.subr.mxu0 0.0
    %149 = vmatpush1.xpose.msra.mxu0 0.0
    %150 = vmatprep.subr.mxu0 0.0
    %151 = vmatpush1.xpose.msra.mxu0 0.0
    %152 = vmatprep.subr.mxu0 0.0
    %153 = vmatpush1.xpose.msra.mxu0 0.0
    %154 = vmatprep.subr.mxu0 0.0
    %155 = vmatpush1.xpose.msra.mxu0 0.0
    %156 = vmatprep.subr.mxu0 0.0
    %157 = vmatpush1.xpose.msra.mxu0 0.0
    %158 = vmatprep.subr.mxu0 0.0
    %159 = vmatpush1.xpose.msra.mxu0 0.0
    %160 = vmatprep.subr.mxu0 0.0
    %161 = vmatpush1.xpose.msra.mxu0 0.0
    %162 = vmatprep.subr.mxu0 0.0
    %163 = vmatpush1.xpose.msra.mxu0 0.0
    %164 = vmatprep.subr.mxu0 0.0
    %165 = vmatpush1.xpose.msra.mxu0 0.0
    %166 = vmatprep.subr.mxu0 0.0
    %167 = vmatpush1.xpose.msra.mxu0 0.0
    %168 = vmatprep.mubr.f32.mxu0 0.0
    %169 = vmatmul.mubr.f32.gmra.mrb[0].mxu0 %v54
    %v170 = vpop.f32.mrb[0].mxu0
    %v171 = vadd.f32 0.0, %v170
    %v172 = vpop.f32.mrb[0].mxu0
    %173 = vdwg.mxu0
    %v174 = vadd.f32 %v34, %v171
    %175 = vst [vmem:[#allocation2] sm:$0xff] %v174
    // Predicated region
    $region22: #{custom_module_list_forward_stacked.1} parent=1 // pred_check
      %p176 = pneg %p29
    $region23: #{custom_module_list_forward_stacked.1} parent=1 // pred_check_branch
      %178 = sbr.rel (%p176) target = $region25
    $region24: #{custom_module_list_forward_stacked.1} parent=1 // pred_region
      %v179 = vld [vmem:[#allocation2] sm:$0xff]
      %v180 = vld [vmem:[%s2] sm:$0x1]
      %v182 = vlaneseq
      %v183 = vshrl.u32 %v182, 7
      %v184 = vsub.s32 0, %v183
      %v185 = vrot.slane %v180, %v184
      %v187 = vadd.f32 %v179, %v185
      %188 = vst [vmem:[#allocation6] sm:$0xff] %v187
    $region25: #{custom_module_list_forward_stacked.1} parent=1 // pred_fallthru
      _
    // Predicated region
    $region26: #{custom_module_list_forward_stacked.1} parent=1 // pred_check
      _
    $region27: #{custom_module_list_forward_stacked.1} parent=1 // pred_check_branch
      %190 = sbr.rel (0) target = $region29
    $region28: #{custom_module_list_forward_stacked.1} parent=1 // pred_region
      %s192 = ssub.s32 128, 128
      %193 = vsyncadd [#allocation5], %s192
      %s195 = sshll.u32 [#allocation6], 4
      %s196 = int_to_ptr.vmem [resolvable:$true] %s195
      %198 = dma.vmem_to_hbm [thread:$0]  %s196, 128, %s3, [#allocation5]
    $region29: #{custom_module_list_forward_stacked.1} parent=1 // pred_fallthru
      _
    // Predicated region
    $region30: #{custom_module_list_forward_stacked.1} parent=1 // pred_check
      _
    $region31: #{custom_module_list_forward_stacked.1} parent=1 // pred_check_branch
      %200 = sbr.rel (0) target = $region33
    $region32: #{custom_module_list_forward_stacked.1} parent=1 // pred_region
      %201 = dma.done [#allocation5], 128
    $region33: #{custom_module_list_forward_stacked.1} parent=1 // pred_fallthru
      _
    %202 = vsyncpa [#allocation4], 1
    %203 = vsyncpa [#allocation5], 1

</llo_original>
